<compile_context>
chip_gen: v7x
topology: tpu7x:2x2x1
jax: 0.10.0
libtpu: 0.0.40
codegen_flags: <defaults>
</compile_context>

<pallas_src>
import functools
import math

import jax
import jax.numpy as jnp
import numpy as np
from jax import lax
from jax.experimental import pallas as pl
from jax.experimental.pallas import tpu as pltpu


def _conv_pool_gelu_kernel(x_ref, w_ref, b_ref, m_ref, sel_ref, o_ref,
                           *, N, K, H, W, f):
    # x_ref   : (N, C, S)        images; channels on sublanes, H*W on lanes
    # w_ref   : (C, K*K*C)       conv weight as (C_out, [ky,kx,C_in] flattened)
    # b_ref   : (C, 1)           conv bias (broadcasts over the lane axis)
    # m_ref   : (K*K*C, N*S)     constant 0/1 tap-validity masks (pre-broadcast)
    # sel_ref : (N*S, N*Ho*Wo)   constant 0/1 block-diag pooling selection
    # o_ref   : (C, N*Ho*Wo)     lane-dense pooled + activated output slab
    S = H * W
    L = N * S
    pad = K // 2

    # Stack the N images side by side on the lane axis: (C, N*S).
    # S is a multiple of 128 here, so this concat is vreg-aligned.
    xcat = jnp.concatenate([x_ref[n] for n in range(N)], axis=1)

    # im2col: one lane roll per tap on the stacked slab (XLU), then one
    # elementwise multiply by the constant border mask (VPU).
    rolled = []
    for ky in range(K):
        for kx in range(K):
            s = (ky - pad) * W + (kx - pad)          # lane shift of this tap
            xs = xcat if s == 0 else pltpu.roll(xcat, shift=(-s) % L, axis=1)
            rolled.append(xs)                        # (C, L) each
    patches = jnp.concatenate(rolled, axis=0) * m_ref[...]   # (K*K*C, L)

    # Conv as a single deep MXU matmul + bias: (C, K*K*C) @ (K*K*C, L).
    acc = jnp.dot(w_ref[...], patches, preferred_element_type=jnp.float32)
    acc = acc + b_ref[...]                           # (C, 1) lane-broadcast

    # MaxPool2d(f): lane rolls + maximum on the dense (C, L) slab.  Wrapped
    # values land only at positions the selection matrix never reads.
    m = acc
    for dw in range(1, f):
        m = jnp.maximum(m, pltpu.roll(acc, shift=(L - dw) % L, axis=1))
    mm = m
    for dh in range(1, f):
        mm = jnp.maximum(mm, pltpu.roll(m, shift=(L - dh * W) % L, axis=1))

    # Compaction of the pooled positions on the (idle) MXU:
    # (C, L) @ (L, N*Ho*Wo) -> lane-dense (C, N*Ho*Wo).
    pooled = jnp.dot(mm, sel_ref[...], preferred_element_type=jnp.float32)

    # Exact (erf-based) GELU, matching nn.GELU() default.
    inv_sqrt2 = 1.0 / math.sqrt(2.0)
    out = 0.5 * pooled * (1.0 + lax.erf(pooled * inv_sqrt2))
    o_ref[...] = out.astype(o_ref.dtype)


def conv2d_downsampler(img_nchw, weight_oikk, bias, *, d_kernel, f_downsample):
    """Pallas implementation of Conv2DDownsampler.forward.

    img_nchw:    (N, C, H, W) float32   -- same convention as PyTorch
    weight_oikk: (C, C, K, K) float32   -- nn.Conv2d weight layout
    bias:        (C,)         float32
    returns:     (N, C, H//f, W//f) float32
    """
    N, C, H, W = img_nchw.shape
    K, f = d_kernel, f_downsample
    assert K % 2 == 1, "padding=K//2 matches nn.Conv2d only for odd kernels"
    assert H % f == 0 and W % f == 0, "non-divisible pooling not supported"
    S = H * W
    L = N * S
    Ho, Wo = H // f, W // f
    P = N * Ho * Wo
    pad = K // 2

    # Pure reshapes + a tiny (K*K*C*C) weight shuffle; no image transpose/pad.
    x = img_nchw.reshape(N, C, S)                                   # (N, C, S)
    w = weight_oikk.transpose(0, 2, 3, 1).reshape(C, K * K * C)     # (C_out, K*K*C_in)
    b = bias.reshape(C, 1)

    # Constant, pre-broadcast 0/1 border masks: (K*K*C, N*S).  Built host-side
    # once; resident in VMEM -> no in-kernel iota/compare/select per step.
    rows = np.arange(S) // W
    cols = np.arange(S) % W
    tap_masks = []
    for ky in range(K):
        for kx in range(K):
            mv = ((rows >= pad - ky) & (rows < H + pad - ky) &
                  (cols >= pad - kx) & (cols < W + pad - kx)).astype(np.float32)
            mv = np.tile(mv, N)                       # (L,)
            tap_masks.append(np.broadcast_to(mv[None, :], (C, L)))
    masks = np.ascontiguousarray(np.concatenate(tap_masks, axis=0))  # (K*K*C, L)

    # Constant block-diagonal 0/1 selection matrix for the pooled-position
    # compaction: (N*S, N*Ho*Wo).
    sel = np.zeros((L, P), dtype=np.float32)
    for n in range(N):
        for ho in range(Ho):
            for wo in range(Wo):
                sel[n * S + ho * f * W + wo * f, n * Ho * Wo + ho * Wo + wo] = 1.0

    kernel = functools.partial(_conv_pool_gelu_kernel, N=N, K=K, H=H, W=W, f=f)

    out_flat = pl.pallas_call(
        kernel,
        out_shape=jax.ShapeDtypeStruct((C, P), jnp.float32),
        grid_spec=pltpu.PrefetchScalarGridSpec(
            num_scalar_prefetch=0,
            grid=(1,),                                # batch folded: one step
            in_specs=[
                pl.BlockSpec((N, C, S), lambda i: (0, 0, 0)),
                pl.BlockSpec((C, K * K * C), lambda i: (0, 0)),
                pl.BlockSpec((C, 1), lambda i: (0, 0)),
                pl.BlockSpec((K * K * C, L), lambda i: (0, 0)),
                pl.BlockSpec((L, P), lambda i: (0, 0)),
            ],
            out_specs=pl.BlockSpec((C, P), lambda i: (0, 0)),
        ),
        compiler_params=pltpu.CompilerParams(
            dimension_semantics=("arbitrary",)),
    )(x, w, b, jnp.asarray(masks), jnp.asarray(sel))

    # Lane-dense slab (C, N*Ho*Wo) -> NCHW (tiny 4 KiB XLA op).
    return out_flat.reshape(C, N, Ho, Wo).transpose(1, 0, 2, 3)


def _reference(img_nchw, weight_oikk, bias, *, d_kernel, f_downsample):
    pad = d_kernel // 2
    y = lax.conv_general_dilated(
        img_nchw, weight_oikk, window_strides=(1, 1),
        padding=[(pad, pad), (pad, pad)],
        dimension_numbers=("NCHW", "OIHW", "NCHW"),
    )
    y = y + bias[None, :, None, None]
    y = lax.reduce_window(
        y, -jnp.inf, lax.max,
        (1, 1, f_downsample, f_downsample),
        (1, 1, f_downsample, f_downsample),
        "VALID",
    )
    return 0.5 * y * (1.0 + lax.erf(y / jnp.sqrt(2.0)))


if __name__ == "__main__":
    # Config: d_latent=8 channels, d_in=16 spatial, d_kernel=3, f_downsample=2
    d_latent, d_in, d_kernel, f_downsample = 8, 16, 3, 2
    N = 2

    key = jax.random.PRNGKey(0)
    k_img, k_w, k_b = jax.random.split(key, 3)

    img = jax.random.normal(k_img, (N, d_latent, d_in, d_in), dtype=jnp.float32)

    # Deterministic parameter init (shapes match nn.Conv2d(d_latent, d_latent, K)).
    fan_in = d_latent * d_kernel * d_kernel
    bound = 1.0 / math.sqrt(fan_in)
    weight = jax.random.uniform(
        k_w, (d_latent, d_latent, d_kernel, d_kernel),
        minval=-bound, maxval=bound, dtype=jnp.float32)
    bias = jax.random.uniform(
        k_b, (d_latent,), minval=-bound, maxval=bound, dtype=jnp.float32)

    out = conv2d_downsampler(
        img, weight, bias, d_kernel=d_kernel, f_downsample=f_downsample)
    out = jax.block_until_ready(out)

    ref = _reference(
        img, weight, bias, d_kernel=d_kernel, f_downsample=f_downsample)
    ref = jax.block_until_ready(ref)

    assert out.shape == (N, d_latent, d_in // f_downsample, d_in // f_downsample)
    np.testing.assert_allclose(np.asarray(out), np.asarray(ref),
                               rtol=1e-4, atol=1e-4)
    print("KERNEL_OK")
</pallas_src>

<mosaic_0001>
module attributes {stable_mosaic.version = 11 : i64} {
  func.func @_conv_pool_gelu_kernel(%arg0: i32, %arg1: memref<2x8x256xf32, #tpu.memory_space<vmem>>, %arg2: memref<8x72xf32, #tpu.memory_space<vmem>>, %arg3: memref<8x1xf32, #tpu.memory_space<vmem>>, %arg4: memref<72x512xf32, #tpu.memory_space<vmem>>, %arg5: memref<512x128xf32, #tpu.memory_space<vmem>>, %arg6: memref<8x128xf32, #tpu.memory_space<vmem>>) attributes {dimension_semantics = [#tpu.dimension_semantics<arbitrary>], iteration_bounds = array<i64: 1>, scalar_prefetch = 0 : i64, scratch_operands = 0 : i64, tpu.core_type = #tpu.core_type<tc>, window_params = [{pipeline_mode = #tpu.pipeline_mode<synchronous>, transform_indices = @transform_0, window_bounds = array<i64: 2, 8, 256>}, {pipeline_mode = #tpu.pipeline_mode<synchronous>, transform_indices = @transform_1, window_bounds = array<i64: 8, 72>}, {pipeline_mode = #tpu.pipeline_mode<synchronous>, transform_indices = @transform_2, window_bounds = array<i64: 8, 1>}, {pipeline_mode = #tpu.pipeline_mode<synchronous>, transform_indices = @transform_3, window_bounds = array<i64: 72, 512>}, {pipeline_mode = #tpu.pipeline_mode<synchronous>, transform_indices = @transform_4, window_bounds = array<i64: 512, 128>}, {pipeline_mode = #tpu.pipeline_mode<synchronous>, transform_indices = @transform_5, window_bounds = array<i64: 8, 128>}]} {
    %c0 = arith.constant 0 : index
    %c0_0 = arith.constant 0 : index
    %c0_1 = arith.constant 0 : index
    %0 = vector.load %arg1[%c0, %c0_0, %c0_1] : memref<2x8x256xf32, #tpu.memory_space<vmem>>, vector<1x8x256xf32>
    %1 = vector.shape_cast %0 : vector<1x8x256xf32> to vector<8x256xf32>
    %c1 = arith.constant 1 : index
    %c0_2 = arith.constant 0 : index
    %c0_3 = arith.constant 0 : index
    %2 = vector.load %arg1[%c1, %c0_2, %c0_3] : memref<2x8x256xf32, #tpu.memory_space<vmem>>, vector<1x8x256xf32>
    %3 = vector.shape_cast %2 : vector<1x8x256xf32> to vector<8x256xf32>
    %4 = tpu.concatenate %1, %3 in 1 : vector<8x256xf32>, vector<8x256xf32> -> vector<8x512xf32>
    %c17_i32 = arith.constant 17 : i32
    %5 = tpu.dynamic_rotate %4 by %c17_i32 dim 1 : vector<8x512xf32>, i32 -> vector<8x512xf32>
    %c16_i32 = arith.constant 16 : i32
    %6 = tpu.dynamic_rotate %4 by %c16_i32 dim 1 : vector<8x512xf32>, i32 -> vector<8x512xf32>
    %c15_i32 = arith.constant 15 : i32
    %7 = tpu.dynamic_rotate %4 by %c15_i32 dim 1 : vector<8x512xf32>, i32 -> vector<8x512xf32>
    %c1_i32 = arith.constant 1 : i32
    %8 = tpu.dynamic_rotate %4 by %c1_i32 dim 1 : vector<8x512xf32>, i32 -> vector<8x512xf32>
    %c511_i32 = arith.constant 511 : i32
    %9 = tpu.dynamic_rotate %4 by %c511_i32 dim 1 : vector<8x512xf32>, i32 -> vector<8x512xf32>
    %c497_i32 = arith.constant 497 : i32
    %10 = tpu.dynamic_rotate %4 by %c497_i32 dim 1 : vector<8x512xf32>, i32 -> vector<8x512xf32>
    %c496_i32 = arith.constant 496 : i32
    %11 = tpu.dynamic_rotate %4 by %c496_i32 dim 1 : vector<8x512xf32>, i32 -> vector<8x512xf32>
    %c495_i32 = arith.constant 495 : i32
    %12 = tpu.dynamic_rotate %4 by %c495_i32 dim 1 : vector<8x512xf32>, i32 -> vector<8x512xf32>
    %13 = tpu.concatenate %5, %6, %7, %8, %4, %9, %10, %11, %12 in 0 : vector<8x512xf32>, vector<8x512xf32>, vector<8x512xf32>, vector<8x512xf32>, vector<8x512xf32>, vector<8x512xf32>, vector<8x512xf32>, vector<8x512xf32>, vector<8x512xf32> -> vector<72x512xf32>
    %c0_4 = arith.constant 0 : index
    %c0_5 = arith.constant 0 : index
    %14 = vector.load %arg4[%c0_4, %c0_5] : memref<72x512xf32, #tpu.memory_space<vmem>>, vector<72x512xf32>
    %15 = arith.mulf %13, %14 : vector<72x512xf32>
    %c0_6 = arith.constant 0 : index
    %c0_7 = arith.constant 0 : index
    %16 = vector.load %arg2[%c0_6, %c0_7] : memref<8x72xf32, #tpu.memory_space<vmem>>, vector<8x72xf32>
    %cst = arith.constant dense<0.000000e+00> : vector<8x512xf32>
    %17 = tpu.matmul %16, %15, %cst {dimension_numbers = #tpu.dot_dimension_numbers<[1], [0], [0], [1], [0, 0, 1, 1], [], []>} : vector<8x72xf32>, vector<72x512xf32>, vector<8x512xf32> -> vector<8x512xf32>
    %c0_8 = arith.constant 0 : index
    %c0_9 = arith.constant 0 : index
    %18 = vector.load %arg3[%c0_8, %c0_9] : memref<8x1xf32, #tpu.memory_space<vmem>>, vector<8x1xf32>
    %19 = vector.broadcast %18 : vector<8x1xf32> to vector<8x512xf32>
    %20 = arith.addf %17, %19 : vector<8x512xf32>
    %c511_i32_10 = arith.constant 511 : i32
    %21 = tpu.dynamic_rotate %20 by %c511_i32_10 dim 1 : vector<8x512xf32>, i32 -> vector<8x512xf32>
    %22 = arith.maximumf %20, %21 : vector<8x512xf32>
    %c496_i32_11 = arith.constant 496 : i32
    %23 = tpu.dynamic_rotate %22 by %c496_i32_11 dim 1 : vector<8x512xf32>, i32 -> vector<8x512xf32>
    %24 = arith.maximumf %22, %23 : vector<8x512xf32>
    %c0_12 = arith.constant 0 : index
    %c0_13 = arith.constant 0 : index
    %25 = vector.load %arg5[%c0_12, %c0_13] : memref<512x128xf32, #tpu.memory_space<vmem>>, vector<512x128xf32>
    %cst_14 = arith.constant dense<0.000000e+00> : vector<8x128xf32>
    %26 = tpu.matmul %24, %25, %cst_14 {dimension_numbers = #tpu.dot_dimension_numbers<[1], [0], [0], [1], [0, 0, 1, 1], [], []>} : vector<8x512xf32>, vector<512x128xf32>, vector<8x128xf32> -> vector<8x128xf32>
    %cst_15 = arith.constant 5.000000e-01 : f32
    %27 = vector.broadcast %cst_15 : f32 to vector<8x128xf32>
    %28 = arith.mulf %27, %26 : vector<8x128xf32>
    %cst_16 = arith.constant 0.707106769 : f32
    %29 = vector.broadcast %cst_16 : f32 to vector<8x128xf32>
    %30 = arith.mulf %26, %29 : vector<8x128xf32>
    %31 = math.erf %30 : vector<8x128xf32>
    %cst_17 = arith.constant 1.000000e+00 : f32
    %32 = vector.broadcast %cst_17 : f32 to vector<8x128xf32>
    %33 = arith.addf %32, %31 : vector<8x128xf32>
    %34 = arith.mulf %28, %33 : vector<8x128xf32>
    %c0_18 = arith.constant 0 : index
    %c0_19 = arith.constant 0 : index
    %35 = vector.load %arg6[%c0_18, %c0_19] : memref<8x128xf32, #tpu.memory_space<vmem>>, vector<8x128xf32>
    tpu.vector_store %arg6[%c0_18, %c0_19], %34 {strides = array<i32>} : memref<8x128xf32, #tpu.memory_space<vmem>>, vector<8x128xf32>,
    return
  }
  func.func @transform_0(%arg0: i32) -> (i32, i32, i32) {
    %c0_i32 = arith.constant 0 : i32
    %c0_i32_0 = arith.constant 0 : i32
    %c0_i32_1 = arith.constant 0 : i32
    %c0_i32_2 = arith.constant 0 : i32
    return %c0_i32, %c0_i32_0, %c0_i32_1 : i32, i32, i32
  }
  func.func @transform_1(%arg0: i32) -> (i32, i32) {
    %c0_i32 = arith.constant 0 : i32
    %c0_i32_0 = arith.constant 0 : i32
    %c0_i32_1 = arith.constant 0 : i32
    return %c0_i32, %c0_i32_0 : i32, i32
  }
  func.func @transform_2(%arg0: i32) -> (i32, i32) {
    %c0_i32 = arith.constant 0 : i32
    %c0_i32_0 = arith.constant 0 : i32
    %c0_i32_1 = arith.constant 0 : i32
    return %c0_i32, %c0_i32_0 : i32, i32
  }
  func.func @transform_3(%arg0: i32) -> (i32, i32) {
    %c0_i32 = arith.constant 0 : i32
    %c0_i32_0 = arith.constant 0 : i32
    %c0_i32_1 = arith.constant 0 : i32
    return %c0_i32, %c0_i32_0 : i32, i32
  }
  func.func @transform_4(%arg0: i32) -> (i32, i32) {
    %c0_i32 = arith.constant 0 : i32
    %c0_i32_0 = arith.constant 0 : i32
    %c0_i32_1 = arith.constant 0 : i32
    return %c0_i32, %c0_i32_0 : i32, i32
  }
  func.func @transform_5(%arg0: i32) -> (i32, i32) {
    %c0_i32 = arith.constant 0 : i32
    %c0_i32_0 = arith.constant 0 : i32
    %c0_i32_1 = arith.constant 0 : i32
    return %c0_i32, %c0_i32_0 : i32, i32
  }
}

</mosaic_0001>

<llo_original>
// kernel: tpu_custom_call.1
$region0: #{tpu_custom_call.1}
  #allocation0 [shape = 'u32[]', space=smem, size = 0x4, offset = 0x4, fixed_abs, tag = 'smem constant byte address 0x4 - core index']
  #allocation1 [shape = 'u32[144,128]{1,0:T(1,128)}', space=vmem, size = 0x12000, scoped, tag = 'internal scratch']
  %s0 = inlined_call_operand.hbm [shape: f32[2,8,256], index: 0, kind: input, shape index: {}]
  %s1 = inlined_call_operand.vmem [shape: f32[8,72], index: 1, kind: input, shape index: {}]
  %s2 = inlined_call_operand.vmem [shape: f32[8,1], index: 2, kind: input, shape index: {}]
  %s3 = inlined_call_operand.hbm [shape: f32[72,512], index: 3, kind: input, shape index: {}]
  %s4 = inlined_call_operand.hbm [shape: f32[512,128], index: 4, kind: input, shape index: {}]
  %s5 = inlined_call_operand.hbm [shape: f32[8,128], index: 5, kind: output, shape index: {}]
  %s6 = sld [smem:[#allocation0]]
  $region42: #{tpu_custom_call.1} parent=0
    _
  %s8 = ssub.s32 1, %s6
  %s9 = scalar_select 0, %s8, %s6
  $region1: #{tpu_custom_call.1} parent=0
    #allocation2 [shape = 'u8[16384]{0}', space=vmem, size = 0x4000, scoped, tag = 'input window, operand 0, single buffered']
    #allocation3 [shape = 's32[1]{0}', space=sflag, size = 0x4, scoped, tag = 'scoped memory for tpu_custom_call.1']
    #allocation4 [shape = 's32[1]{0}', space=sflag, size = 0x4, scoped, tag = 'scoped memory for tpu_custom_call.1']
    #allocation5 [shape = 'u8[147456]{0}', space=vmem, size = 0x24000, scoped, tag = 'input window, operand 3, single buffered']
    #allocation6 [shape = 's32[1]{0}', space=sflag, size = 0x4, scoped, tag = 'scoped memory for tpu_custom_call.1']
    #allocation7 [shape = 'u8[262144]{0}', space=vmem, size = 0x40000, scoped, tag = 'input window, operand 4, single buffered']
    #allocation8 [shape = 'u8[4096]{0}', space=vmem, size = 0x1000, scoped, tag = 'output window, operand 0, single buffered']
    %10 = vsyncpa [#allocation3], 0
    %11 = vsyncpa [#allocation6], 0
    %12 = vsyncpa [#allocation4], 0
    // Predicated region
    $region2: #{tpu_custom_call.1} parent=1 // pred_check
      _
    $region3: #{tpu_custom_call.1} parent=1 // pred_check_branch
      %14 = sbr.rel (0) target = $region5
    $region4: #{tpu_custom_call.1} parent=1 // pred_region
      %s16 = ssub.s32 512, 512
      %17 = vsyncadd [#allocation3], %s16
      %s18 = sshll.u32 [#allocation2], 4
      %s19 = int_to_ptr.vmem [resolvable:$true] %s18
      %24 = dma.hbm_to_vmem [thread:$0]  %s0, 512, %s19, [#allocation3], 256, 256, 16
    $region5: #{tpu_custom_call.1} parent=1 // pred_fallthru
      _
    // Predicated region
    $region6: #{tpu_custom_call.1} parent=1 // pred_check
      _
    $region7: #{tpu_custom_call.1} parent=1 // pred_check_branch
      %26 = sbr.rel (0) target = $region9
    $region8: #{tpu_custom_call.1} parent=1 // pred_region
      _
    $region9: #{tpu_custom_call.1} parent=1 // pred_fallthru
      _
    // Predicated region
    $region10: #{tpu_custom_call.1} parent=1 // pred_check
      _
    $region11: #{tpu_custom_call.1} parent=1 // pred_check_branch
      %28 = sbr.rel (0) target = $region13
    $region12: #{tpu_custom_call.1} parent=1 // pred_region
      _
    $region13: #{tpu_custom_call.1} parent=1 // pred_fallthru
      _
    // Predicated region
    $region14: #{tpu_custom_call.1} parent=1 // pred_check
      _
    $region15: #{tpu_custom_call.1} parent=1 // pred_check_branch
      %30 = sbr.rel (0) target = $region17
    $region16: #{tpu_custom_call.1} parent=1 // pred_region
      %s32 = ssub.s32 4608, 4608
      %33 = vsyncadd [#allocation6], %s32
      %s34 = sshll.u32 [#allocation5], 4
      %s35 = int_to_ptr.vmem [resolvable:$true] %s34
      %40 = dma.hbm_to_vmem [thread:$0]  %s3, 4608, %s35, [#allocation6], 512, 512, 32
    $region17: #{tpu_custom_call.1} parent=1 // pred_fallthru
      _
    // Predicated region
    $region18: #{tpu_custom_call.1} parent=1 // pred_check
      _
    $region19: #{tpu_custom_call.1} parent=1 // pred_check_branch
      %42 = sbr.rel (0) target = $region21
    $region20: #{tpu_custom_call.1} parent=1 // pred_region
      %s44 = ssub.s32 8192, 8192
      %45 = vsyncadd [#allocation6], %s44
      %s46 = sshll.u32 [#allocation7], 4
      %s47 = int_to_ptr.vmem [resolvable:$true] %s46
      %52 = dma.hbm_to_vmem [thread:$0]  %s4, 8192, %s47, [#allocation6], 128, 128, 8
    $region21: #{tpu_custom_call.1} parent=1 // pred_fallthru
      _
    // Predicated region
    $region22: #{tpu_custom_call.1} parent=1 // pred_check
      _
    $region23: #{tpu_custom_call.1} parent=1 // pred_check_branch
      %54 = sbr.rel (0) target = $region25
    $region24: #{tpu_custom_call.1} parent=1 // pred_region
      %55 = dma.done [#allocation3], 512
    $region25: #{tpu_custom_call.1} parent=1 // pred_fallthru
      _
    // Predicated region
    $region26: #{tpu_custom_call.1} parent=1 // pred_check
      _
    $region27: #{tpu_custom_call.1} parent=1 // pred_check_branch
      %57 = sbr.rel (0) target = $region29
    $region28: #{tpu_custom_call.1} parent=1 // pred_region
      %58 = dma.done [#allocation6], 4608
    $region29: #{tpu_custom_call.1} parent=1 // pred_fallthru
      _
    // Predicated region
    $region30: #{tpu_custom_call.1} parent=1 // pred_check
      _
    $region31: #{tpu_custom_call.1} parent=1 // pred_check_branch
      %60 = sbr.rel (0) target = $region33
    $region32: #{tpu_custom_call.1} parent=1 // pred_region
      %61 = dma.done [#allocation6], 8192
    $region33: #{tpu_custom_call.1} parent=1 // pred_fallthru
      _
    %v62 = vld [vmem:[#allocation2] sm:$0xff]
    %v63 = vld [vmem:[#allocation2 + $0x8] sm:$0xff]
    %s64 = scalar_lea.vmem [#allocation2], 16
    %v65 = vld [vmem:[%s64] sm:$0xff]
    %v66 = vld [vmem:[%s64 + $0x8] sm:$0xff]
    %67 = vrot.lane.b32.xlu0 %v62, 17
    %v68 = vpop.permute.xlu0 %67
    %69 = vrot.lane.b32.xlu0 %v63, 17
    %v70 = vpop.permute.xlu0 %69
    %71 = vrot.lane.b32.xlu0 %v65, 17
    %v72 = vpop.permute.xlu0 %71
    %73 = vrot.lane.b32.xlu0 %v66, 17
    %v74 = vpop.permute.xlu0 %73
    %v75 = vlaneseq
    %v76 = vand.u32 %v75, 127
    %vm77 = vcmp.lt.s32.totalorder %v76, 17
    %v78 = vsel %vm77, %v72, %v74
    %v79 = vsel %vm77, %v70, %v72
    %v80 = vsel %vm77, %v68, %v70
    %v81 = vsel %vm77, %v74, %v68
    %82 = vrot.lane.b32.xlu0 %v62, 16
    %v83 = vpop.permute.xlu0 %82
    %84 = vrot.lane.b32.xlu0 %v63, 16
    %v85 = vpop.permute.xlu0 %84
    %86 = vrot.lane.b32.xlu0 %v65, 16
    %v87 = vpop.permute.xlu0 %86
    %88 = vrot.lane.b32.xlu0 %v66, 16
    %v89 = vpop.permute.xlu0 %88
    %vm90 = vcmp.lt.s32.totalorder %v76, 16
    %v91 = vsel %vm90, %v87, %v89
    %v92 = vsel %vm90, %v85, %v87
    %v93 = vsel %vm90, %v83, %v85
    %v94 = vsel %vm90, %v89, %v83
    %95 = vrot.lane.b32.xlu0 %v62, 15
    %v96 = vpop.permute.xlu0 %95
    %97 = vrot.lane.b32.xlu0 %v63, 15
    %v98 = vpop.permute.xlu0 %97
    %99 = vrot.lane.b32.xlu0 %v65, 15
    %v100 = vpop.permute.xlu0 %99
    %101 = vrot.lane.b32.xlu0 %v66, 15
    %v102 = vpop.permute.xlu0 %101
    %vm103 = vcmp.lt.s32.totalorder %v76, 15
    %v104 = vsel %vm103, %v100, %v102
    %v105 = vsel %vm103, %v98, %v100
    %v106 = vsel %vm103, %v96, %v98
    %v107 = vsel %vm103, %v102, %v96
    %108 = vrot.lane.b32.xlu0 %v62, 1
    %v109 = vpop.permute.xlu0 %108
    %110 = vrot.lane.b32.xlu0 %v63, 1
    %v111 = vpop.permute.xlu0 %110
    %112 = vrot.lane.b32.xlu0 %v65, 1
    %v113 = vpop.permute.xlu0 %112
    %114 = vrot.lane.b32.xlu0 %v66, 1
    %v115 = vpop.permute.xlu0 %114
    %vm116 = vcmp.lt.s32.totalorder %v76, 1
    %v117 = vsel %vm116, %v113, %v115
    %v118 = vsel %vm116, %v111, %v113
    %v119 = vsel %vm116, %v109, %v111
    %v120 = vsel %vm116, %v115, %v109
    %121 = vrot.lane.b32.xlu0 %v62, 127
    %v122 = vpop.permute.xlu0 %121
    %123 = vrot.lane.b32.xlu0 %v63, 127
    %v124 = vpop.permute.xlu0 %123
    %125 = vrot.lane.b32.xlu0 %v65, 127
    %v126 = vpop.permute.xlu0 %125
    %127 = vrot.lane.b32.xlu0 %v66, 127
    %v128 = vpop.permute.xlu0 %127
    %vm129 = vcmp.lt.s32.totalorder %v76, 127
    %v130 = vsel %vm129, %v126, %v128
    %v131 = vsel %vm129, %v124, %v126
    %v132 = vsel %vm129, %v122, %v124
    %v133 = vsel %vm129, %v128, %v122
    %134 = vrot.lane.b32.xlu0 %v62, 113
    %v135 = vpop.permute.xlu0 %134
    %136 = vrot.lane.b32.xlu0 %v63, 113
    %v137 = vpop.permute.xlu0 %136
    %138 = vrot.lane.b32.xlu0 %v65, 113
    %v139 = vpop.permute.xlu0 %138
    %140 = vrot.lane.b32.xlu0 %v66, 113
    %v141 = vpop.permute.xlu0 %140
    %vm142 = vcmp.lt.s32.totalorder %v76, 113
    %v143 = vsel %vm142, %v139, %v141
    %v144 = vsel %vm142, %v137, %v139
    %v145 = vsel %vm142, %v135, %v137
    %v146 = vsel %vm142, %v141, %v135
    %147 = vrot.lane.b32.xlu0 %v62, 112
    %v148 = vpop.permute.xlu0 %147
    %149 = vrot.lane.b32.xlu0 %v63, 112
    %v150 = vpop.permute.xlu0 %149
    %151 = vrot.lane.b32.xlu0 %v65, 112
    %v152 = vpop.permute.xlu0 %151
    %153 = vrot.lane.b32.xlu0 %v66, 112
    %v154 = vpop.permute.xlu0 %153
    %vm155 = vcmp.lt.s32.totalorder %v76, 112
    %v156 = vsel %vm155, %v152, %v154
    %v157 = vsel %vm155, %v150, %v152
    %v158 = vsel %vm155, %v148, %v150
    %v159 = vsel %vm155, %v154, %v148
    %160 = vrot.lane.b32.xlu0 %v62, 111
    %v161 = vpop.permute.xlu0 %160
    %162 = vrot.lane.b32.xlu0 %v63, 111
    %v163 = vpop.permute.xlu0 %162
    %164 = vrot.lane.b32.xlu0 %v65, 111
    %v165 = vpop.permute.xlu0 %164
    %166 = vrot.lane.b32.xlu0 %v66, 111
    %v167 = vpop.permute.xlu0 %166
    %vm168 = vcmp.lt.s32.totalorder %v76, 111
    %v169 = vsel %vm168, %v165, %v167
    %v170 = vsel %vm168, %v163, %v165
    %v171 = vsel %vm168, %v161, %v163
    %v172 = vsel %vm168, %v167, %v161
    %v173 = vld [vmem:[#allocation5] sm:$0xff]
    %v174 = vld [vmem:[#allocation5 + $0x8] sm:$0xff]
    %v175 = vld [vmem:[#allocation5 + $0x10] sm:$0xff]
    %v176 = vld [vmem:[#allocation5 + $0x18] sm:$0xff]
    %v177 = vld [vmem:[#allocation5 + $0x20] sm:$0xff]
    %v178 = vld [vmem:[#allocation5 + $0x28] sm:$0xff]
    %v179 = vld [vmem:[#allocation5 + $0x30] sm:$0xff]
    %v180 = vld [vmem:[#allocation5 + $0x38] sm:$0xff]
    %v181 = vld [vmem:[#allocation5 + $0x40] sm:$0xff]
    %v182 = vld [vmem:[#allocation5 + $0x48] sm:$0xff]
    %v183 = vld [vmem:[#allocation5 + $0x50] sm:$0xff]
    %v184 = vld [vmem:[#allocation5 + $0x58] sm:$0xff]
    %v185 = vld [vmem:[#allocation5 + $0x60] sm:$0xff]
    %v186 = vld [vmem:[#allocation5 + $0x68] sm:$0xff]
    %v187 = vld [vmem:[#allocation5 + $0x70] sm:$0xff]
    %v188 = vld [vmem:[#allocation5 + $0x78] sm:$0xff]
    %v189 = vld [vmem:[#allocation5 + $0x80] sm:$0xff]
    %v190 = vld [vmem:[#allocation5 + $0x88] sm:$0xff]
    %v191 = vld [vmem:[#allocation5 + $0x90] sm:$0xff]
    %v192 = vld [vmem:[#allocation5 + $0x98] sm:$0xff]
    %v193 = vld [vmem:[#allocation5 + $0xa0] sm:$0xff]
    %v194 = vld [vmem:[#allocation5 + $0xa8] sm:$0xff]
    %v195 = vld [vmem:[#allocation5 + $0xb0] sm:$0xff]
    %v196 = vld [vmem:[#allocation5 + $0xb8] sm:$0xff]
    %v197 = vld [vmem:[#allocation5 + $0xc0] sm:$0xff]
    %v198 = vld [vmem:[#allocation5 + $0xc8] sm:$0xff]
    %v199 = vld [vmem:[#allocation5 + $0xd0] sm:$0xff]
    %v200 = vld [vmem:[#allocation5 + $0xd8] sm:$0xff]
    %v201 = vld [vmem:[#allocation5 + $0xe0] sm:$0xff]
    %v202 = vld [vmem:[#allocation5 + $0xe8] sm:$0xff]
    %v203 = vld [vmem:[#allocation5 + $0xf0] sm:$0xff]
    %v204 = vld [vmem:[#allocation5 + $0xf8] sm:$0xff]
    %v205 = vld [vmem:[#allocation5 + $0x100] sm:$0xff]
    %v206 = vld [vmem:[#allocation5 + $0x108] sm:$0xff]
    %v207 = vld [vmem:[#allocation5 + $0x110] sm:$0xff]
    %v208 = vld [vmem:[#allocation5 + $0x118] sm:$0xff]
    %v209 = vmul.f32 %v81, %v173
    %v210 = vmul.f32 %v80, %v174
    %v211 = vmul.f32 %v79, %v175
    %v212 = vmul.f32 %v78, %v176
    %v213 = vmul.f32 %v94, %v177
    %v214 = vmul.f32 %v93, %v178
    %v215 = vmul.f32 %v92, %v179
    %v216 = vmul.f32 %v91, %v180
    %v217 = vmul.f32 %v107, %v181
    %v218 = vmul.f32 %v106, %v182
    %v219 = vmul.f32 %v105, %v183
    %v220 = vmul.f32 %v104, %v184
    %v221 = vmul.f32 %v120, %v185
    %v222 = vmul.f32 %v119, %v186
    %v223 = vmul.f32 %v118, %v187
    %v224 = vmul.f32 %v117, %v188
    %v225 = vmul.f32 %v62, %v189
    %v226 = vmul.f32 %v63, %v190
    %v227 = vmul.f32 %v65, %v191
    %v228 = vmul.f32 %v66, %v192
    %v229 = vmul.f32 %v132, %v193
    %v230 = vmul.f32 %v131, %v194
    %v231 = vmul.f32 %v130, %v195
    %v232 = vmul.f32 %v133, %v196
    %v233 = vmul.f32 %v145, %v197
    %v234 = vmul.f32 %v144, %v198
    %v235 = vmul.f32 %v143, %v199
    %v236 = vmul.f32 %v146, %v200
    %v237 = vmul.f32 %v158, %v201
    %v238 = vmul.f32 %v157, %v202
    %v239 = vmul.f32 %v156, %v203
    %v240 = vmul.f32 %v159, %v204
    %v241 = vmul.f32 %v171, %v205
    %v242 = vmul.f32 %v170, %v206
    %v243 = vmul.f32 %v169, %v207
    %v244 = vmul.f32 %v172, %v208
    %v245 = vld [vmem:[%s1] sm:$0xff]
    %v246 = vld [vmem:[%s2] sm:$0xff]
    %248 = vset.pattern.permute.xlu0 0
    %249 = vperm.xlu0 %248, %v246
    %v250 = vpop.permute.xlu0 %249
    %vm252 = vcmask 588800
    %v254 = vsel %vm252, %v245, 0
    %256 = vmatprep.subr.mxu0 %v210
    %257 = vmatpush1.msra.mxu0 %v209
    %258 = vmatprep.subr.mxu0 %v214
    %259 = vmatpush1.msra.mxu0 %v213
    %260 = vmatprep.subr.mxu0 %v218
    %261 = vmatpush1.msra.mxu0 %v217
    %262 = vmatprep.subr.mxu0 %v222
    %263 = vmatpush1.msra.mxu0 %v221
    %264 = vmatprep.subr.mxu0 %v226
    %265 = vmatpush1.msra.mxu0 %v225
    %266 = vmatprep.subr.mxu0 %v230
    %267 = vmatpush1.msra.mxu0 %v229
    %268 = vmatprep.subr.mxu0 %v234
    %269 = vmatpush1.msra.mxu0 %v233
    %270 = vmatprep.subr.mxu0 %v238
    %271 = vmatpush1.msra.mxu0 %v237
    %272 = vmatprep.subr.mxu0 %v242
    %273 = vmatpush1.msra.mxu0 %v241
    %274 = vmatprep.subr.mxu0 0.0
    %275 = vmatpush1.msra.mxu0 0.0
    %276 = vmatprep.subr.mxu0 0.0
    %277 = vmatpush1.msra.mxu0 0.0
    %278 = vmatprep.subr.mxu0 0.0
    %279 = vmatpush1.msra.mxu0 0.0
    %280 = vmatprep.subr.mxu0 0.0
    %281 = vmatpush1.msra.mxu0 0.0
    %282 = vmatprep.subr.mxu0 0.0
    %283 = vmatpush1.msra.mxu0 0.0
    %284 = vmatprep.subr.mxu0 0.0
    %285 = vmatpush1.msra.mxu0 0.0
    %286 = vmatprep.subr.mxu0 0.0
    %287 = vmatpush1.msra.mxu0 0.0
    %288 = vmatprep.subr.mxu0 0.0
    %289 = vmatpush1.msra.mxu0 0.0
    %290 = vmatprep.subr.mxu0 0.0
    %291 = vmatpush1.msra.mxu0 0.0
    %292 = vmatprep.subr.mxu0 0.0
    %293 = vmatpush1.msra.mxu0 0.0
    %294 = vmatprep.subr.mxu0 0.0
    %295 = vmatpush1.msra.mxu0 0.0
    %296 = vmatprep.subr.mxu0 0.0
    %297 = vmatpush1.msra.mxu0 0.0
    %298 = vmatprep.subr.mxu0 0.0
    %299 = vmatpush1.msra.mxu0 0.0
    %300 = vmatprep.subr.mxu0 0.0
    %301 = vmatpush1.msra.mxu0 0.0
    %302 = vmatprep.subr.mxu0 0.0
    %303 = vmatpush1.msra.mxu0 0.0
    %304 = vmatprep.subr.mxu0 0.0
    %305 = vmatpush1.msra.mxu0 0.0
    %306 = vmatprep.subr.mxu0 0.0
    %307 = vmatpush1.msra.mxu0 0.0
    %308 = vmatprep.subr.mxu0 0.0
    %309 = vmatpush1.msra.mxu0 0.0
    %310 = vmatprep.subr.mxu0 0.0
    %311 = vmatpush1.msra.mxu0 0.0
    %312 = vmatprep.subr.mxu0 0.0
    %313 = vmatpush1.msra.mxu0 0.0
    %314 = vmatprep.subr.mxu0 0.0
    %315 = vmatpush1.msra.mxu0 0.0
    %316 = vmatprep.subr.mxu0 0.0
    %317 = vmatpush1.msra.mxu0 0.0
    %318 = vmatprep.subr.mxu0 0.0
    %319 = vmatpush1.msra.mxu0 0.0
    %320 = vmatprep.mubr.f32.mxu0 0.0
    %321 = vmatmul.mubr.f32.gmra.mrb[0].mxu0 %v254
    %v322 = vpop.f32.mrb[0].mxu0
    %v323 = vadd.f32 %v250, %v322
    %v324 = vpop.f32.mrb[0].mxu0
    %v325 = vadd.f32 %v250, %v324
    %326 = vdwg.mxu0
    %327 = vmatprep.subr.mxu0 %v212
    %328 = vmatpush1.msra.mxu0 %v211
    %329 = vmatprep.subr.mxu0 %v216
    %330 = vmatpush1.msra.mxu0 %v215
    %331 = vmatprep.subr.mxu0 %v220
    %332 = vmatpush1.msra.mxu0 %v219
    %333 = vmatprep.subr.mxu0 %v224
    %334 = vmatpush1.msra.mxu0 %v223
    %335 = vmatprep.subr.mxu0 %v228
    %336 = vmatpush1.msra.mxu0 %v227
    %337 = vmatprep.subr.mxu0 %v232
    %338 = vmatpush1.msra.mxu0 %v231
    %339 = vmatprep.subr.mxu0 %v236
    %340 = vmatpush1.msra.mxu0 %v235
    %341 = vmatprep.subr.mxu0 %v240
    %342 = vmatpush1.msra.mxu0 %v239
    %343 = vmatprep.subr.mxu0 %v244
    %344 = vmatpush1.msra.mxu0 %v243
    %345 = vmatprep.subr.mxu0 0.0
    %346 = vmatpush1.msra.mxu0 0.0
    %347 = vmatprep.subr.mxu0 0.0
    %348 = vmatpush1.msra.mxu0 0.0
    %349 = vmatprep.subr.mxu0 0.0
    %350 = vmatpush1.msra.mxu0 0.0
    %351 = vmatprep.subr.mxu0 0.0
    %352 = vmatpush1.msra.mxu0 0.0
    %353 = vmatprep.subr.mxu0 0.0
    %354 = vmatpush1.msra.mxu0 0.0
    %355 = vmatprep.subr.mxu0 0.0
    %356 = vmatpush1.msra.mxu0 0.0
    %357 = vmatprep.subr.mxu0 0.0
    %358 = vmatpush1.msra.mxu0 0.0
    %359 = vmatprep.subr.mxu0 0.0
    %360 = vmatpush1.msra.mxu0 0.0
    %361 = vmatprep.subr.mxu0 0.0
    %362 = vmatpush1.msra.mxu0 0.0
    %363 = vmatprep.subr.mxu0 0.0
    %364 = vmatpush1.msra.mxu0 0.0
    %365 = vmatprep.subr.mxu0 0.0
    %366 = vmatpush1.msra.mxu0 0.0
    %367 = vmatprep.subr.mxu0 0.0
    %368 = vmatpush1.msra.mxu0 0.0
    %369 = vmatprep.subr.mxu0 0.0
    %370 = vmatpush1.msra.mxu0 0.0
    %371 = vmatprep.subr.mxu0 0.0
    %372 = vmatpush1.msra.mxu0 0.0
    %373 = vmatprep.subr.mxu0 0.0
    %374 = vmatpush1.msra.mxu0 0.0
    %375 = vmatprep.subr.mxu0 0.0
    %376 = vmatpush1.msra.mxu0 0.0
    %377 = vmatprep.subr.mxu0 0.0
    %378 = vmatpush1.msra.mxu0 0.0
    %379 = vmatprep.subr.mxu0 0.0
    %380 = vmatpush1.msra.mxu0 0.0
    %381 = vmatprep.subr.mxu0 0.0
    %382 = vmatpush1.msra.mxu0 0.0
    %383 = vmatprep.subr.mxu0 0.0
    %384 = vmatpush1.msra.mxu0 0.0
    %385 = vmatprep.subr.mxu0 0.0
    %386 = vmatpush1.msra.mxu0 0.0
    %387 = vmatprep.subr.mxu0 0.0
    %388 = vmatpush1.msra.mxu0 0.0
    %389 = vmatprep.subr.mxu0 0.0
    %390 = vmatpush1.msra.mxu0 0.0
    %391 = vmatprep.mubr.f32.mxu0 0.0
    %392 = vmatmul.mubr.f32.gmra.mrb[0].mxu0 %v254
    %v393 = vpop.f32.mrb[0].mxu0
    %v394 = vadd.f32 %v250, %v393
    %v395 = vpop.f32.mrb[0].mxu0
    %v396 = vadd.f32 %v250, %v395
    %397 = vdwg.mxu0
    %398 = vrot.lane.b32.xlu0 %v323, 127
    %v399 = vpop.permute.xlu0 %398
    %400 = vrot.lane.b32.xlu0 %v325, 127
    %v401 = vpop.permute.xlu0 %400
    %402 = vrot.lane.b32.xlu0 %v394, 127
    %v403 = vpop.permute.xlu0 %402
    %404 = vrot.lane.b32.xlu0 %v396, 127
    %v405 = vpop.permute.xlu0 %404
    %v406 = vsel %vm129, %v403, %v405
    %v407 = vsel %vm129, %v401, %v403
    %v408 = vsel %vm129, %v399, %v401
    %v409 = vsel %vm129, %v405, %v399
    %v410 = vmax.f32 %v323, %v408
    %v411 = vmax.f32 %v325, %v407
    %v412 = vmax.f32 %v394, %v406
    %v413 = vmax.f32 %v396, %v409
    %414 = vrot.lane.b32.xlu0 %v410, 112
    %v415 = vpop.permute.xlu0 %414
    %416 = vrot.lane.b32.xlu0 %v411, 112
    %v417 = vpop.permute.xlu0 %416
    %418 = vrot.lane.b32.xlu0 %v412, 112
    %v419 = vpop.permute.xlu0 %418
    %420 = vrot.lane.b32.xlu0 %v413, 112
    %v421 = vpop.permute.xlu0 %420
    %v422 = vsel %vm155, %v419, %v421
    %v423 = vsel %vm155, %v417, %v419
    %v424 = vsel %vm155, %v415, %v417
    %v425 = vsel %vm155, %v421, %v415
    %v426 = vmax.f32 %v410, %v424
    %v427 = vmax.f32 %v411, %v423
    %v428 = vmax.f32 %v412, %v422
    %v429 = vmax.f32 %v413, %v425
    %v430 = vld [vmem:[#allocation7] sm:$0xff]
    %v431 = vld [vmem:[#allocation7 + $0x8] sm:$0xff]
    %v432 = vld [vmem:[#allocation7 + $0x10] sm:$0xff]
    %v433 = vld [vmem:[#allocation7 + $0x18] sm:$0xff]
    %v434 = vld [vmem:[#allocation7 + $0x20] sm:$0xff]
    %v435 = vld [vmem:[#allocation7 + $0x28] sm:$0xff]
    %v436 = vld [vmem:[#allocation7 + $0x30] sm:$0xff]
    %v437 = vld [vmem:[#allocation7 + $0x38] sm:$0xff]
    %v438 = vld [vmem:[#allocation7 + $0x40] sm:$0xff]
    %v439 = vld [vmem:[#allocation7 + $0x48] sm:$0xff]
    %v440 = vld [vmem:[#allocation7 + $0x50] sm:$0xff]
    %v441 = vld [vmem:[#allocation7 + $0x58] sm:$0xff]
    %v442 = vld [vmem:[#allocation7 + $0x60] sm:$0xff]
    %v443 = vld [vmem:[#allocation7 + $0x68] sm:$0xff]
    %v444 = vld [vmem:[#allocation7 + $0x70] sm:$0xff]
    %v445 = vld [vmem:[#allocation7 + $0x78] sm:$0xff]
    %v446 = vld [vmem:[#allocation7 + $0x80] sm:$0xff]
    %v447 = vld [vmem:[#allocation7 + $0x88] sm:$0xff]
    %v448 = vld [vmem:[#allocation7 + $0x90] sm:$0xff]
    %v449 = vld [vmem:[#allocation7 + $0x98] sm:$0xff]
    %v450 = vld [vmem:[#allocation7 + $0xa0] sm:$0xff]
    %v451 = vld [vmem:[#allocation7 + $0xa8] sm:$0xff]
    %v452 = vld [vmem:[#allocation7 + $0xb0] sm:$0xff]
    %v453 = vld [vmem:[#allocation7 + $0xb8] sm:$0xff]
    %v454 = vld [vmem:[#allocation7 + $0xc0] sm:$0xff]
    %v455 = vld [vmem:[#allocation7 + $0xc8] sm:$0xff]
    %v456 = vld [vmem:[#allocation7 + $0xd0] sm:$0xff]
    %v457 = vld [vmem:[#allocation7 + $0xd8] sm:$0xff]
    %v458 = vld [vmem:[#allocation7 + $0xe0] sm:$0xff]
    %v459 = vld [vmem:[#allocation7 + $0xe8] sm:$0xff]
    %v460 = vld [vmem:[#allocation7 + $0xf0] sm:$0xff]
    %v461 = vld [vmem:[#allocation7 + $0xf8] sm:$0xff]
    %v462 = vld [vmem:[#allocation7 + $0x100] sm:$0xff]
    %v463 = vld [vmem:[#allocation7 + $0x108] sm:$0xff]
    %v464 = vld [vmem:[#allocation7 + $0x110] sm:$0xff]
    %v465 = vld [vmem:[#allocation7 + $0x118] sm:$0xff]
    %v466 = vld [vmem:[#allocation7 + $0x120] sm:$0xff]
    %v467 = vld [vmem:[#allocation7 + $0x128] sm:$0xff]
    %v468 = vld [vmem:[#allocation7 + $0x130] sm:$0xff]
    %v469 = vld [vmem:[#allocation7 + $0x138] sm:$0xff]
    %v470 = vld [vmem:[#allocation7 + $0x140] sm:$0xff]
    %v471 = vld [vmem:[#allocation7 + $0x148] sm:$0xff]
    %v472 = vld [vmem:[#allocation7 + $0x150] sm:$0xff]
    %v473 = vld [vmem:[#allocation7 + $0x158] sm:$0xff]
    %v474 = vld [vmem:[#allocation7 + $0x160] sm:$0xff]
    %v475 = vld [vmem:[#allocation7 + $0x168] sm:$0xff]
    %v476 = vld [vmem:[#allocation7 + $0x170] sm:$0xff]
    %v477 = vld [vmem:[#allocation7 + $0x178] sm:$0xff]
    %v478 = vld [vmem:[#allocation7 + $0x180] sm:$0xff]
    %v479 = vld [vmem:[#allocation7 + $0x188] sm:$0xff]
    %v480 = vld [vmem:[#allocation7 + $0x190] sm:$0xff]
    %v481 = vld [vmem:[#allocation7 + $0x198] sm:$0xff]
    %v482 = vld [vmem:[#allocation7 + $0x1a0] sm:$0xff]
    %v483 = vld [vmem:[#allocation7 + $0x1a8] sm:$0xff]
    %v484 = vld [vmem:[#allocation7 + $0x1b0] sm:$0xff]
    %v485 = vld [vmem:[#allocation7 + $0x1b8] sm:$0xff]
    %v486 = vld [vmem:[#allocation7 + $0x1c0] sm:$0xff]
    %v487 = vld [vmem:[#allocation7 + $0x1c8] sm:$0xff]
    %v488 = vld [vmem:[#allocation7 + $0x1d0] sm:$0xff]
    %v489 = vld [vmem:[#allocation7 + $0x1d8] sm:$0xff]
    %v490 = vld [vmem:[#allocation7 + $0x1e0] sm:$0xff]
    %v491 = vld [vmem:[#allocation7 + $0x1e8] sm:$0xff]
    %v492 = vld [vmem:[#allocation7 + $0x1f0] sm:$0xff]
    %v493 = vld [vmem:[#allocation7 + $0x1f8] sm:$0xff]
    %494 = vmatprep.subr.mxu0 0.0
    %495 = vmatpush1.msra.mxu0 %v430
    %496 = vmatprep.subr.mxu0 0.0
    %497 = vmatpush1.msra.mxu0 %v431
    %498 = vmatprep.subr.mxu0 0.0
    %499 = vmatpush1.msra.mxu0 %v432
    %500 = vmatprep.subr.mxu0 0.0
    %501 = vmatpush1.msra.mxu0 %v433
    %502 = vmatprep.subr.mxu0 0.0
    %503 = vmatpush1.msra.mxu0 %v434
    %504 = vmatprep.subr.mxu0 0.0
    %505 = vmatpush1.msra.mxu0 %v435
    %506 = vmatprep.subr.mxu0 0.0
    %507 = vmatpush1.msra.mxu0 %v436
    %508 = vmatprep.subr.mxu0 0.0
    %509 = vmatpush1.msra.mxu0 %v437
    %510 = vmatprep.subr.mxu0 0.0
    %511 = vmatpush1.msra.mxu0 %v438
    %512 = vmatprep.subr.mxu0 0.0
    %513 = vmatpush1.msra.mxu0 %v439
    %514 = vmatprep.subr.mxu0 0.0
    %515 = vmatpush1.msra.mxu0 %v440
    %516 = vmatprep.subr.mxu0 0.0
    %517 = vmatpush1.msra.mxu0 %v441
    %518 = vmatprep.subr.mxu0 0.0
    %519 = vmatpush1.msra.mxu0 %v442
    %520 = vmatprep.subr.mxu0 0.0
    %521 = vmatpush1.msra.mxu0 %v443
    %522 = vmatprep.subr.mxu0 0.0
    %523 = vmatpush1.msra.mxu0 %v444
    %524 = vmatprep.subr.mxu0 0.0
    %525 = vmatpush1.msra.mxu0 %v445
    %526 = vmatprep.subr.mxu0 0.0
    %527 = vmatpush1.msra.mxu0 %v446
    %528 = vmatprep.subr.mxu0 0.0
    %529 = vmatpush1.msra.mxu0 %v447
    %530 = vmatprep.subr.mxu0 0.0
    %531 = vmatpush1.msra.mxu0 %v448
    %532 = vmatprep.subr.mxu0 0.0
    %533 = vmatpush1.msra.mxu0 %v449
    %534 = vmatprep.subr.mxu0 0.0
    %535 = vmatpush1.msra.mxu0 %v450
    %536 = vmatprep.subr.mxu0 0.0
    %537 = vmatpush1.msra.mxu0 %v451
    %538 = vmatprep.subr.mxu0 0.0
    %539 = vmatpush1.msra.mxu0 %v452
    %540 = vmatprep.subr.mxu0 0.0
    %541 = vmatpush1.msra.mxu0 %v453
    %542 = vmatprep.subr.mxu0 0.0
    %543 = vmatpush1.msra.mxu0 %v454
    %544 = vmatprep.subr.mxu0 0.0
    %545 = vmatpush1.msra.mxu0 %v455
    %546 = vmatprep.subr.mxu0 0.0
    %547 = vmatpush1.msra.mxu0 %v456
    %548 = vmatprep.subr.mxu0 0.0
    %549 = vmatpush1.msra.mxu0 %v457
    %550 = vmatprep.subr.mxu0 0.0
    %551 = vmatpush1.msra.mxu0 %v458
    %552 = vmatprep.subr.mxu0 0.0
    %553 = vmatpush1.msra.mxu0 %v459
    %554 = vmatprep.subr.mxu0 0.0
    %555 = vmatpush1.msra.mxu0 %v460
    %556 = vmatprep.subr.mxu0 0.0
    %557 = vmatpush1.msra.mxu0 %v461
    %558 = vmatprep.mubr.f32.mxu0 %v427
    %559 = vmatmul.mubr.f32.gmra.mrb[0].mxu0 %v426
    %v560 = vpop.f32.mrb[0].mxu0
    %v561 = vadd.f32 0.0, %v560
    %v562 = vpop.f32.mrb[0].mxu0
    %563 = vdwg.mxu0
    %564 = vmatprep.subr.mxu0 0.0
    %565 = vmatpush1.msra.mxu0 %v462
    %566 = vmatprep.subr.mxu0 0.0
    %567 = vmatpush1.msra.mxu0 %v463
    %568 = vmatprep.subr.mxu0 0.0
    %569 = vmatpush1.msra.mxu0 %v464
    %570 = vmatprep.subr.mxu0 0.0
    %571 = vmatpush1.msra.mxu0 %v465
    %572 = vmatprep.subr.mxu0 0.0
    %573 = vmatpush1.msra.mxu0 %v466
    %574 = vmatprep.subr.mxu0 0.0
    %575 = vmatpush1.msra.mxu0 %v467
    %576 = vmatprep.subr.mxu0 0.0
    %577 = vmatpush1.msra.mxu0 %v468
    %578 = vmatprep.subr.mxu0 0.0
    %579 = vmatpush1.msra.mxu0 %v469
    %580 = vmatprep.subr.mxu0 0.0
    %581 = vmatpush1.msra.mxu0 %v470
    %582 = vmatprep.subr.mxu0 0.0
    %583 = vmatpush1.msra.mxu0 %v471
    %584 = vmatprep.subr.mxu0 0.0
    %585 = vmatpush1.msra.mxu0 %v472
    %586 = vmatprep.subr.mxu0 0.0
    %587 = vmatpush1.msra.mxu0 %v473
    %588 = vmatprep.subr.mxu0 0.0
    %589 = vmatpush1.msra.mxu0 %v474
    %590 = vmatprep.subr.mxu0 0.0
    %591 = vmatpush1.msra.mxu0 %v475
    %592 = vmatprep.subr.mxu0 0.0
    %593 = vmatpush1.msra.mxu0 %v476
    %594 = vmatprep.subr.mxu0 0.0
    %595 = vmatpush1.msra.mxu0 %v477
    %596 = vmatprep.subr.mxu0 0.0
    %597 = vmatpush1.msra.mxu0 %v478
    %598 = vmatprep.subr.mxu0 0.0
    %599 = vmatpush1.msra.mxu0 %v479
    %600 = vmatprep.subr.mxu0 0.0
    %601 = vmatpush1.msra.mxu0 %v480
    %602 = vmatprep.subr.mxu0 0.0
    %603 = vmatpush1.msra.mxu0 %v481
    %604 = vmatprep.subr.mxu0 0.0
    %605 = vmatpush1.msra.mxu0 %v482
    %606 = vmatprep.subr.mxu0 0.0
    %607 = vmatpush1.msra.mxu0 %v483
    %608 = vmatprep.subr.mxu0 0.0
    %609 = vmatpush1.msra.mxu0 %v484
    %610 = vmatprep.subr.mxu0 0.0
    %611 = vmatpush1.msra.mxu0 %v485
    %612 = vmatprep.subr.mxu0 0.0
    %613 = vmatpush1.msra.mxu0 %v486
    %614 = vmatprep.subr.mxu0 0.0
    %615 = vmatpush1.msra.mxu0 %v487
    %616 = vmatprep.subr.mxu0 0.0
    %617 = vmatpush1.msra.mxu0 %v488
    %618 = vmatprep.subr.mxu0 0.0
    %619 = vmatpush1.msra.mxu0 %v489
    %620 = vmatprep.subr.mxu0 0.0
    %621 = vmatpush1.msra.mxu0 %v490
    %622 = vmatprep.subr.mxu0 0.0
    %623 = vmatpush1.msra.mxu0 %v491
    %624 = vmatprep.subr.mxu0 0.0
    %625 = vmatpush1.msra.mxu0 %v492
    %626 = vmatprep.subr.mxu0 0.0
    %627 = vmatpush1.msra.mxu0 %v493
    %628 = vmatprep.mubr.f32.mxu0 %v429
    %629 = vmatmul.mubr.f32.gmra.mrb[0].mxu0 %v428
    %v630 = vpop.f32.mrb[0].mxu0
    %v631 = vadd.f32 %v561, %v630
    %v632 = vpop.f32.mrb[0].mxu0
    %633 = vdwg.mxu0
    %v634 = vmul.f32 %v631, 0.5
    %v635 = vmul.f32 %v631, 0.70710677
    %v636 = verf.f32.pop %v635
    %v637 = vadd.f32 %v636, 1.0
    %v638 = vmul.f32 %v634, %v637
    %639 = vst [vmem:[#allocation8] sm:$0xff] %v638
    // Predicated region
    $region34: #{tpu_custom_call.1} parent=1 // pred_check
      _
    $region35: #{tpu_custom_call.1} parent=1 // pred_check_branch
      %641 = sbr.rel (0) target = $region37
    $region36: #{tpu_custom_call.1} parent=1 // pred_region
      %s643 = ssub.s32 128, 128
      %644 = vsyncadd [#allocation4], %s643
      %s646 = sshll.u32 [#allocation8], 4
      %s647 = int_to_ptr.vmem [resolvable:$true] %s646
      %649 = dma.vmem_to_hbm [thread:$0]  %s647, 128, %s5, [#allocation4]
    $region37: #{tpu_custom_call.1} parent=1 // pred_fallthru
      _
    // Predicated region
    $region38: #{tpu_custom_call.1} parent=1 // pred_check
      _
    $region39: #{tpu_custom_call.1} parent=1 // pred_check_branch
      %651 = sbr.rel (0) target = $region41
    $region40: #{tpu_custom_call.1} parent=1 // pred_region
      %652 = dma.done [#allocation4], 128
    $region41: #{tpu_custom_call.1} parent=1 // pred_fallthru
      _
    %653 = vsyncpa [#allocation3], 1
    %654 = vsyncpa [#allocation6], 1
    %655 = vsyncpa [#allocation4], 1

</llo_original>
